<compile_context>
chip_gen: v7x
topology: tpu7x:2x2x1
jax: 0.10.0
libtpu: 0.0.40
codegen_flags: <defaults>
</compile_context>

<pallas_src>
import math

import jax
import jax.numpy as jnp
import numpy as np
from jax.experimental import pallas as pl
from jax.experimental.pallas import tpu as pltpu  # noqa: F401  (TPU backend)


# Packed gate-block order (kernel layout) -> source gate index in PyTorch's
# (i, f, g, o) weight order. Layout: block0=i, block1=f, block2=o, block3=g.
PACKED_GATE_SRC = (0, 1, 3, 2)


# ----------------------------------------------------------------------------
# Fused Pallas kernel: K packed LSTM streams -> last hidden -> Linear+sigmoid
# ----------------------------------------------------------------------------
def dlstm_fused_kernel(x_ref, wih_ref, whh_ref, b_ref, wout_ref, bout_ref, o_ref):
    T, KH = x_ref.shape            # KH = K * H
    G3 = 3 * KH                    # boundary between sigmoid gates and tanh gate
    whh = whh_ref[...]             # (KH, 4*KH) - kept vreg/VMEM resident

    # Hoisted input projection: one (T, KH) x (KH, 4KH) matmul + bias, done
    # once before the serial recurrence.
    gates_x = (
        jnp.dot(x_ref[...], wih_ref[...], preferred_element_type=jnp.float32)
        + b_ref[...]
    )                              # (T, 4*KH)

    # vreg-resident state for both streams: [h0 | h1], [c0 | c1].
    h = jnp.zeros((1, KH), jnp.float32)
    c = jnp.zeros((1, KH), jnp.float32)

    # Fully unrolled recurrence (T is a static Python int). Gate column layout
    # is gate-major / stream-minor: [i0 i1 | f0 f1 | o0 o1 | g0 g1].
    for t in range(T):
        gates = gates_x[t:t + 1, :] + jnp.dot(
            h, whh, preferred_element_type=jnp.float32
        )                          # (1, 4*KH)
        ifo = jax.nn.sigmoid(gates[:, :G3])   # sigmoid only where it is needed
        g = jnp.tanh(gates[:, G3:])           # tanh only on the g block
        i = ifo[:, 0 * KH:1 * KH]
        f = ifo[:, 1 * KH:2 * KH]
        o = ifo[:, 2 * KH:3 * KH]
        c = f * c + i * g
        h = o * jnp.tanh(c)

    # h == [h_stream0_last, h_stream1_last] == torch.cat(encoding_tensors, -1).
    # Fused output head: sigmoid(features @ W_out + b_out).
    o_ref[...] = jax.nn.sigmoid(
        jnp.dot(h, wout_ref[...], preferred_element_type=jnp.float32)
        + bout_ref[...]
    )


# ----------------------------------------------------------------------------
# Wrapper
# ----------------------------------------------------------------------------
def dlstm_forward(token_seqs, params):
    """token_seqs: list of K int32 arrays, each of length T (equal lengths)."""
    # TODO(synk): the PyTorch forward allows per-stream sequences of differing
    # length; this implementation assumes equal lengths T for all K streams.
    K = len(token_seqs)
    # Embedding lookup (plain-JAX gather glue) + stream packing -> (T, K*H).
    xs = [params["emb"][k][token_seqs[k]].astype(jnp.float32) for k in range(K)]
    x_packed = jnp.concatenate(xs, axis=-1)
    V_out = params["w_out"].shape[-1]

    return pl.pallas_call(
        dlstm_fused_kernel,
        out_shape=jax.ShapeDtypeStruct((1, V_out), jnp.float32),
    )(
        x_packed,
        params["wih_packed"],   # (K*H, 4*K*H)
        params["whh_packed"],   # (K*H, 4*K*H)
        params["b_packed"],     # (1, 4*K*H)
        params["w_out"],        # (K*H, V_out)
        params["b_out"],        # (1, V_out)
    )


# ----------------------------------------------------------------------------
# Weight packing: per-stream (H, 4H) weights (PyTorch i,f,g,o order) ->
# block-diagonal, gate-major (K*H, 4*K*H) layout with kernel gate order
# (i, f, o, g), so one matmul serves both streams and the activations split
# into a contiguous sigmoid prefix and a tanh suffix.
# ----------------------------------------------------------------------------
def pack_streams(wih_list, whh_list, b_list, K, H):
    KH = K * H
    wih_p = jnp.zeros((KH, 4 * KH), jnp.float32)
    whh_p = jnp.zeros((KH, 4 * KH), jnp.float32)
    b_p = jnp.zeros((1, 4 * KH), jnp.float32)
    for k in range(K):
        for blk, g_src in enumerate(PACKED_GATE_SRC):
            col = blk * KH + k * H
            src = slice(g_src * H, (g_src + 1) * H)
            wih_p = wih_p.at[k * H:(k + 1) * H, col:col + H].set(
                wih_list[k][:, src])
            whh_p = whh_p.at[k * H:(k + 1) * H, col:col + H].set(
                whh_list[k][:, src])
            b_p = b_p.at[0, col:col + H].set(b_list[k][0, src])
    return wih_p, whh_p, b_p


# ----------------------------------------------------------------------------
# Pure-JAX reference (unpacked, per-stream, PyTorch gate order) for check
# ----------------------------------------------------------------------------
def dlstm_reference(token_seqs, params):
    K = len(token_seqs)
    hs = []
    for k in range(K):
        x = params["emb"][k][token_seqs[k]].astype(jnp.float32)  # (T, H)
        H = x.shape[-1]
        h = jnp.zeros((1, H), jnp.float32)
        c = jnp.zeros((1, H), jnp.float32)
        for t in range(x.shape[0]):
            gates = x[t:t + 1] @ params["wih"][k] + h @ params["whh"][k] + params["b"][k]
            i = jax.nn.sigmoid(gates[:, 0:H])
            f = jax.nn.sigmoid(gates[:, H:2 * H])
            g = jnp.tanh(gates[:, 2 * H:3 * H])
            o = jax.nn.sigmoid(gates[:, 3 * H:4 * H])
            c = f * c + i * g
            h = o * jnp.tanh(c)
        hs.append(h)
    feat = jnp.concatenate(hs, axis=-1)
    return jax.nn.sigmoid(feat @ params["w_out"] + params["b_out"])


# ----------------------------------------------------------------------------
# Deterministic parameter construction (shapes per DLSTM.__init__)
# ----------------------------------------------------------------------------
def make_params(key, voc_size, K, emb_dim):
    H = emb_dim
    s = 1.0 / math.sqrt(H)
    keys = jax.random.split(key, 4 * K + 2)
    params = {"emb": [], "wih": [], "whh": [], "b": []}
    for k in range(K):
        params["emb"].append(
            jax.random.normal(keys[4 * k + 0], (voc_size[k], H), jnp.float32)
        )
        w_ih = jax.random.uniform(keys[4 * k + 1], (4 * H, H), jnp.float32, -s, s)
        w_hh = jax.random.uniform(keys[4 * k + 2], (4 * H, H), jnp.float32, -s, s)
        b_ih_hh = jax.random.uniform(keys[4 * k + 3], (2, 4 * H), jnp.float32, -s, s)
        params["wih"].append(w_ih.T)                      # (H, 4H)
        params["whh"].append(w_hh.T)                      # (H, 4H)
        params["b"].append((b_ih_hh[0] + b_ih_hh[1]).reshape(1, 4 * H))
    so = 1.0 / math.sqrt(H * K)
    w_out = jax.random.uniform(keys[-2], (voc_size[2], H * K), jnp.float32, -so, so)
    b_out = jax.random.uniform(keys[-1], (voc_size[2],), jnp.float32, -so, so)
    params["w_out"] = w_out.T                             # (K*H, V_out)
    params["b_out"] = b_out.reshape(1, voc_size[2])       # (1, V_out)

    wih_p, whh_p, b_p = pack_streams(params["wih"], params["whh"], params["b"], K, H)
    params["wih_packed"] = wih_p
    params["whh_packed"] = whh_p
    params["b_packed"] = b_p
    return params


if __name__ == "__main__":
    # Small, module-consistent shapes: K=2 streams, vocab sizes (16, 16, 8),
    # emb_dim (= hidden) 32, sequence length 8, batch = 1 (as in forward()).
    voc_size = (16, 16, 8)
    K = 2
    emb_dim = 32
    seq_len = 8

    root = jax.random.PRNGKey(0)
    k_params, k_s0, k_s1 = jax.random.split(root, 3)
    params = make_params(k_params, voc_size, K, emb_dim)
    token_seqs = [
        jax.random.randint(k_s0, (seq_len,), 0, voc_size[0], dtype=jnp.int32),
        jax.random.randint(k_s1, (seq_len,), 0, voc_size[1], dtype=jnp.int32),
    ]

    out = dlstm_forward(token_seqs, params)
    out = jax.block_until_ready(out)

    ref = dlstm_reference(token_seqs, params)
    np.testing.assert_allclose(np.asarray(out), np.asarray(ref), rtol=1e-5, atol=1e-5)
    assert out.shape == (1, voc_size[2])

    print("KERNEL_OK")
</pallas_src>

<mosaic_0001>
module attributes {stable_mosaic.version = 11 : i64} {
  func.func @dlstm_fused_kernel(%arg0: memref<8x64xf32, #tpu.memory_space<vmem>>, %arg1: memref<64x256xf32, #tpu.memory_space<vmem>>, %arg2: memref<64x256xf32, #tpu.memory_space<vmem>>, %arg3: memref<1x256xf32, #tpu.memory_space<vmem>>, %arg4: memref<64x8xf32, #tpu.memory_space<vmem>>, %arg5: memref<1x8xf32, #tpu.memory_space<vmem>>, %arg6: memref<1x8xf32, #tpu.memory_space<vmem>>) attributes {dimension_semantics = [], scalar_prefetch = 0 : i64, scratch_operands = 0 : i64, tpu.core_type = #tpu.core_type<tc>} {
    %c0 = arith.constant 0 : index
    %c0_0 = arith.constant 0 : index
    %0 = vector.load %arg2[%c0, %c0_0] : memref<64x256xf32, #tpu.memory_space<vmem>>, vector<64x256xf32>
    %c0_1 = arith.constant 0 : index
    %c0_2 = arith.constant 0 : index
    %1 = vector.load %arg0[%c0_1, %c0_2] : memref<8x64xf32, #tpu.memory_space<vmem>>, vector<8x64xf32>
    %c0_3 = arith.constant 0 : index
    %c0_4 = arith.constant 0 : index
    %2 = vector.load %arg1[%c0_3, %c0_4] : memref<64x256xf32, #tpu.memory_space<vmem>>, vector<64x256xf32>
    %cst = arith.constant dense<0.000000e+00> : vector<8x256xf32>
    %3 = tpu.matmul %1, %2, %cst {dimension_numbers = #tpu.dot_dimension_numbers<[1], [0], [0], [1], [0, 0, 1, 1], [], []>} : vector<8x64xf32>, vector<64x256xf32>, vector<8x256xf32> -> vector<8x256xf32>
    %c0_5 = arith.constant 0 : index
    %c0_6 = arith.constant 0 : index
    %4 = vector.load %arg3[%c0_5, %c0_6] : memref<1x256xf32, #tpu.memory_space<vmem>>, vector<1x256xf32>
    %5 = vector.broadcast %4 : vector<1x256xf32> to vector<8x256xf32>
    %6 = arith.addf %3, %5 : vector<8x256xf32>
    %cst_7 = arith.constant 0.000000e+00 : f32
    %7 = vector.broadcast %cst_7 : f32 to vector<1x64xf32>
    %cst_8 = arith.constant 0.000000e+00 : f32
    %8 = vector.broadcast %cst_8 : f32 to vector<1x64xf32>
    %9 = vector.extract_strided_slice %6 {offsets = [0, 0], sizes = [1, 256], strides = [1, 1]} : vector<8x256xf32> to vector<1x256xf32>
    %cst_9 = arith.constant dense<0.000000e+00> : vector<1x256xf32>
    %10 = tpu.matmul %7, %0, %cst_9 {dimension_numbers = #tpu.dot_dimension_numbers<[1], [0], [0], [1], [0, 0, 1, 1], [], []>} : vector<1x64xf32>, vector<64x256xf32>, vector<1x256xf32> -> vector<1x256xf32>
    %11 = arith.addf %9, %10 : vector<1x256xf32>
    %12 = vector.extract_strided_slice %11 {offsets = [0, 0], sizes = [1, 192], strides = [1, 1]} : vector<1x256xf32> to vector<1x192xf32>
    %13 = arith.negf %12 : vector<1x192xf32>
    %14 = math.exp %13 : vector<1x192xf32>
    %cst_10 = arith.constant 1.000000e+00 : f32
    %15 = vector.broadcast %cst_10 : f32 to vector<1x192xf32>
    %16 = arith.addf %15, %14 : vector<1x192xf32>
    %17 = arith.divf %15, %16 : vector<1x192xf32>
    %18 = vector.extract_strided_slice %11 {offsets = [0, 192], sizes = [1, 64], strides = [1, 1]} : vector<1x256xf32> to vector<1x64xf32>
    %19 = math.tanh %18 : vector<1x64xf32>
    %20 = vector.extract_strided_slice %17 {offsets = [0, 0], sizes = [1, 64], strides = [1, 1]} : vector<1x192xf32> to vector<1x64xf32>
    %21 = vector.extract_strided_slice %17 {offsets = [0, 64], sizes = [1, 64], strides = [1, 1]} : vector<1x192xf32> to vector<1x64xf32>
    %22 = vector.extract_strided_slice %17 {offsets = [0, 128], sizes = [1, 64], strides = [1, 1]} : vector<1x192xf32> to vector<1x64xf32>
    %23 = arith.mulf %21, %8 : vector<1x64xf32>
    %24 = arith.mulf %20, %19 : vector<1x64xf32>
    %25 = arith.addf %23, %24 : vector<1x64xf32>
    %26 = math.tanh %25 : vector<1x64xf32>
    %27 = arith.mulf %22, %26 : vector<1x64xf32>
    %28 = vector.extract_strided_slice %6 {offsets = [1, 0], sizes = [1, 256], strides = [1, 1]} : vector<8x256xf32> to vector<1x256xf32>
    %cst_11 = arith.constant dense<0.000000e+00> : vector<1x256xf32>
    %29 = tpu.matmul %27, %0, %cst_11 {dimension_numbers = #tpu.dot_dimension_numbers<[1], [0], [0], [1], [0, 0, 1, 1], [], []>} : vector<1x64xf32>, vector<64x256xf32>, vector<1x256xf32> -> vector<1x256xf32>
    %30 = arith.addf %28, %29 : vector<1x256xf32>
    %31 = vector.extract_strided_slice %30 {offsets = [0, 0], sizes = [1, 192], strides = [1, 1]} : vector<1x256xf32> to vector<1x192xf32>
    %32 = arith.negf %31 : vector<1x192xf32>
    %33 = math.exp %32 : vector<1x192xf32>
    %cst_12 = arith.constant 1.000000e+00 : f32
    %34 = vector.broadcast %cst_12 : f32 to vector<1x192xf32>
    %35 = arith.addf %34, %33 : vector<1x192xf32>
    %36 = arith.divf %34, %35 : vector<1x192xf32>
    %37 = vector.extract_strided_slice %30 {offsets = [0, 192], sizes = [1, 64], strides = [1, 1]} : vector<1x256xf32> to vector<1x64xf32>
    %38 = math.tanh %37 : vector<1x64xf32>
    %39 = vector.extract_strided_slice %36 {offsets = [0, 0], sizes = [1, 64], strides = [1, 1]} : vector<1x192xf32> to vector<1x64xf32>
    %40 = vector.extract_strided_slice %36 {offsets = [0, 64], sizes = [1, 64], strides = [1, 1]} : vector<1x192xf32> to vector<1x64xf32>
    %41 = vector.extract_strided_slice %36 {offsets = [0, 128], sizes = [1, 64], strides = [1, 1]} : vector<1x192xf32> to vector<1x64xf32>
    %42 = arith.mulf %40, %25 : vector<1x64xf32>
    %43 = arith.mulf %39, %38 : vector<1x64xf32>
    %44 = arith.addf %42, %43 : vector<1x64xf32>
    %45 = math.tanh %44 : vector<1x64xf32>
    %46 = arith.mulf %41, %45 : vector<1x64xf32>
    %47 = vector.extract_strided_slice %6 {offsets = [2, 0], sizes = [1, 256], strides = [1, 1]} : vector<8x256xf32> to vector<1x256xf32>
    %cst_13 = arith.constant dense<0.000000e+00> : vector<1x256xf32>
    %48 = tpu.matmul %46, %0, %cst_13 {dimension_numbers = #tpu.dot_dimension_numbers<[1], [0], [0], [1], [0, 0, 1, 1], [], []>} : vector<1x64xf32>, vector<64x256xf32>, vector<1x256xf32> -> vector<1x256xf32>
    %49 = arith.addf %47, %48 : vector<1x256xf32>
    %50 = vector.extract_strided_slice %49 {offsets = [0, 0], sizes = [1, 192], strides = [1, 1]} : vector<1x256xf32> to vector<1x192xf32>
    %51 = arith.negf %50 : vector<1x192xf32>
    %52 = math.exp %51 : vector<1x192xf32>
    %cst_14 = arith.constant 1.000000e+00 : f32
    %53 = vector.broadcast %cst_14 : f32 to vector<1x192xf32>
    %54 = arith.addf %53, %52 : vector<1x192xf32>
    %55 = arith.divf %53, %54 : vector<1x192xf32>
    %56 = vector.extract_strided_slice %49 {offsets = [0, 192], sizes = [1, 64], strides = [1, 1]} : vector<1x256xf32> to vector<1x64xf32>
    %57 = math.tanh %56 : vector<1x64xf32>
    %58 = vector.extract_strided_slice %55 {offsets = [0, 0], sizes = [1, 64], strides = [1, 1]} : vector<1x192xf32> to vector<1x64xf32>
    %59 = vector.extract_strided_slice %55 {offsets = [0, 64], sizes = [1, 64], strides = [1, 1]} : vector<1x192xf32> to vector<1x64xf32>
    %60 = vector.extract_strided_slice %55 {offsets = [0, 128], sizes = [1, 64], strides = [1, 1]} : vector<1x192xf32> to vector<1x64xf32>
    %61 = arith.mulf %59, %44 : vector<1x64xf32>
    %62 = arith.mulf %58, %57 : vector<1x64xf32>
    %63 = arith.addf %61, %62 : vector<1x64xf32>
    %64 = math.tanh %63 : vector<1x64xf32>
    %65 = arith.mulf %60, %64 : vector<1x64xf32>
    %66 = vector.extract_strided_slice %6 {offsets = [3, 0], sizes = [1, 256], strides = [1, 1]} : vector<8x256xf32> to vector<1x256xf32>
    %cst_15 = arith.constant dense<0.000000e+00> : vector<1x256xf32>
    %67 = tpu.matmul %65, %0, %cst_15 {dimension_numbers = #tpu.dot_dimension_numbers<[1], [0], [0], [1], [0, 0, 1, 1], [], []>} : vector<1x64xf32>, vector<64x256xf32>, vector<1x256xf32> -> vector<1x256xf32>
    %68 = arith.addf %66, %67 : vector<1x256xf32>
    %69 = vector.extract_strided_slice %68 {offsets = [0, 0], sizes = [1, 192], strides = [1, 1]} : vector<1x256xf32> to vector<1x192xf32>
    %70 = arith.negf %69 : vector<1x192xf32>
    %71 = math.exp %70 : vector<1x192xf32>
    %cst_16 = arith.constant 1.000000e+00 : f32
    %72 = vector.broadcast %cst_16 : f32 to vector<1x192xf32>
    %73 = arith.addf %72, %71 : vector<1x192xf32>
    %74 = arith.divf %72, %73 : vector<1x192xf32>
    %75 = vector.extract_strided_slice %68 {offsets = [0, 192], sizes = [1, 64], strides = [1, 1]} : vector<1x256xf32> to vector<1x64xf32>
    %76 = math.tanh %75 : vector<1x64xf32>
    %77 = vector.extract_strided_slice %74 {offsets = [0, 0], sizes = [1, 64], strides = [1, 1]} : vector<1x192xf32> to vector<1x64xf32>
    %78 = vector.extract_strided_slice %74 {offsets = [0, 64], sizes = [1, 64], strides = [1, 1]} : vector<1x192xf32> to vector<1x64xf32>
    %79 = vector.extract_strided_slice %74 {offsets = [0, 128], sizes = [1, 64], strides = [1, 1]} : vector<1x192xf32> to vector<1x64xf32>
    %80 = arith.mulf %78, %63 : vector<1x64xf32>
    %81 = arith.mulf %77, %76 : vector<1x64xf32>
    %82 = arith.addf %80, %81 : vector<1x64xf32>
    %83 = math.tanh %82 : vector<1x64xf32>
    %84 = arith.mulf %79, %83 : vector<1x64xf32>
    %85 = vector.extract_strided_slice %6 {offsets = [4, 0], sizes = [1, 256], strides = [1, 1]} : vector<8x256xf32> to vector<1x256xf32>
    %cst_17 = arith.constant dense<0.000000e+00> : vector<1x256xf32>
    %86 = tpu.matmul %84, %0, %cst_17 {dimension_numbers = #tpu.dot_dimension_numbers<[1], [0], [0], [1], [0, 0, 1, 1], [], []>} : vector<1x64xf32>, vector<64x256xf32>, vector<1x256xf32> -> vector<1x256xf32>
    %87 = arith.addf %85, %86 : vector<1x256xf32>
    %88 = vector.extract_strided_slice %87 {offsets = [0, 0], sizes = [1, 192], strides = [1, 1]} : vector<1x256xf32> to vector<1x192xf32>
    %89 = arith.negf %88 : vector<1x192xf32>
    %90 = math.exp %89 : vector<1x192xf32>
    %cst_18 = arith.constant 1.000000e+00 : f32
    %91 = vector.broadcast %cst_18 : f32 to vector<1x192xf32>
    %92 = arith.addf %91, %90 : vector<1x192xf32>
    %93 = arith.divf %91, %92 : vector<1x192xf32>
    %94 = vector.extract_strided_slice %87 {offsets = [0, 192], sizes = [1, 64], strides = [1, 1]} : vector<1x256xf32> to vector<1x64xf32>
    %95 = math.tanh %94 : vector<1x64xf32>
    %96 = vector.extract_strided_slice %93 {offsets = [0, 0], sizes = [1, 64], strides = [1, 1]} : vector<1x192xf32> to vector<1x64xf32>
    %97 = vector.extract_strided_slice %93 {offsets = [0, 64], sizes = [1, 64], strides = [1, 1]} : vector<1x192xf32> to vector<1x64xf32>
    %98 = vector.extract_strided_slice %93 {offsets = [0, 128], sizes = [1, 64], strides = [1, 1]} : vector<1x192xf32> to vector<1x64xf32>
    %99 = arith.mulf %97, %82 : vector<1x64xf32>
    %100 = arith.mulf %96, %95 : vector<1x64xf32>
    %101 = arith.addf %99, %100 : vector<1x64xf32>
    %102 = math.tanh %101 : vector<1x64xf32>
    %103 = arith.mulf %98, %102 : vector<1x64xf32>
    %104 = vector.extract_strided_slice %6 {offsets = [5, 0], sizes = [1, 256], strides = [1, 1]} : vector<8x256xf32> to vector<1x256xf32>
    %cst_19 = arith.constant dense<0.000000e+00> : vector<1x256xf32>
    %105 = tpu.matmul %103, %0, %cst_19 {dimension_numbers = #tpu.dot_dimension_numbers<[1], [0], [0], [1], [0, 0, 1, 1], [], []>} : vector<1x64xf32>, vector<64x256xf32>, vector<1x256xf32> -> vector<1x256xf32>
    %106 = arith.addf %104, %105 : vector<1x256xf32>
    %107 = vector.extract_strided_slice %106 {offsets = [0, 0], sizes = [1, 192], strides = [1, 1]} : vector<1x256xf32> to vector<1x192xf32>
    %108 = arith.negf %107 : vector<1x192xf32>
    %109 = math.exp %108 : vector<1x192xf32>
    %cst_20 = arith.constant 1.000000e+00 : f32
    %110 = vector.broadcast %cst_20 : f32 to vector<1x192xf32>
    %111 = arith.addf %110, %109 : vector<1x192xf32>
    %112 = arith.divf %110, %111 : vector<1x192xf32>
    %113 = vector.extract_strided_slice %106 {offsets = [0, 192], sizes = [1, 64], strides = [1, 1]} : vector<1x256xf32> to vector<1x64xf32>
    %114 = math.tanh %113 : vector<1x64xf32>
    %115 = vector.extract_strided_slice %112 {offsets = [0, 0], sizes = [1, 64], strides = [1, 1]} : vector<1x192xf32> to vector<1x64xf32>
    %116 = vector.extract_strided_slice %112 {offsets = [0, 64], sizes = [1, 64], strides = [1, 1]} : vector<1x192xf32> to vector<1x64xf32>
    %117 = vector.extract_strided_slice %112 {offsets = [0, 128], sizes = [1, 64], strides = [1, 1]} : vector<1x192xf32> to vector<1x64xf32>
    %118 = arith.mulf %116, %101 : vector<1x64xf32>
    %119 = arith.mulf %115, %114 : vector<1x64xf32>
    %120 = arith.addf %118, %119 : vector<1x64xf32>
    %121 = math.tanh %120 : vector<1x64xf32>
    %122 = arith.mulf %117, %121 : vector<1x64xf32>
    %123 = vector.extract_strided_slice %6 {offsets = [6, 0], sizes = [1, 256], strides = [1, 1]} : vector<8x256xf32> to vector<1x256xf32>
    %cst_21 = arith.constant dense<0.000000e+00> : vector<1x256xf32>
    %124 = tpu.matmul %122, %0, %cst_21 {dimension_numbers = #tpu.dot_dimension_numbers<[1], [0], [0], [1], [0, 0, 1, 1], [], []>} : vector<1x64xf32>, vector<64x256xf32>, vector<1x256xf32> -> vector<1x256xf32>
    %125 = arith.addf %123, %124 : vector<1x256xf32>
    %126 = vector.extract_strided_slice %125 {offsets = [0, 0], sizes = [1, 192], strides = [1, 1]} : vector<1x256xf32> to vector<1x192xf32>
    %127 = arith.negf %126 : vector<1x192xf32>
    %128 = math.exp %127 : vector<1x192xf32>
    %cst_22 = arith.constant 1.000000e+00 : f32
    %129 = vector.broadcast %cst_22 : f32 to vector<1x192xf32>
    %130 = arith.addf %129, %128 : vector<1x192xf32>
    %131 = arith.divf %129, %130 : vector<1x192xf32>
    %132 = vector.extract_strided_slice %125 {offsets = [0, 192], sizes = [1, 64], strides = [1, 1]} : vector<1x256xf32> to vector<1x64xf32>
    %133 = math.tanh %132 : vector<1x64xf32>
    %134 = vector.extract_strided_slice %131 {offsets = [0, 0], sizes = [1, 64], strides = [1, 1]} : vector<1x192xf32> to vector<1x64xf32>
    %135 = vector.extract_strided_slice %131 {offsets = [0, 64], sizes = [1, 64], strides = [1, 1]} : vector<1x192xf32> to vector<1x64xf32>
    %136 = vector.extract_strided_slice %131 {offsets = [0, 128], sizes = [1, 64], strides = [1, 1]} : vector<1x192xf32> to vector<1x64xf32>
    %137 = arith.mulf %135, %120 : vector<1x64xf32>
    %138 = arith.mulf %134, %133 : vector<1x64xf32>
    %139 = arith.addf %137, %138 : vector<1x64xf32>
    %140 = math.tanh %139 : vector<1x64xf32>
    %141 = arith.mulf %136, %140 : vector<1x64xf32>
    %142 = vector.extract_strided_slice %6 {offsets = [7, 0], sizes = [1, 256], strides = [1, 1]} : vector<8x256xf32> to vector<1x256xf32>
    %cst_23 = arith.constant dense<0.000000e+00> : vector<1x256xf32>
    %143 = tpu.matmul %141, %0, %cst_23 {dimension_numbers = #tpu.dot_dimension_numbers<[1], [0], [0], [1], [0, 0, 1, 1], [], []>} : vector<1x64xf32>, vector<64x256xf32>, vector<1x256xf32> -> vector<1x256xf32>
    %144 = arith.addf %142, %143 : vector<1x256xf32>
    %145 = vector.extract_strided_slice %144 {offsets = [0, 0], sizes = [1, 192], strides = [1, 1]} : vector<1x256xf32> to vector<1x192xf32>
    %146 = arith.negf %145 : vector<1x192xf32>
    %147 = math.exp %146 : vector<1x192xf32>
    %cst_24 = arith.constant 1.000000e+00 : f32
    %148 = vector.broadcast %cst_24 : f32 to vector<1x192xf32>
    %149 = arith.addf %148, %147 : vector<1x192xf32>
    %150 = arith.divf %148, %149 : vector<1x192xf32>
    %151 = vector.extract_strided_slice %144 {offsets = [0, 192], sizes = [1, 64], strides = [1, 1]} : vector<1x256xf32> to vector<1x64xf32>
    %152 = math.tanh %151 : vector<1x64xf32>
    %153 = vector.extract_strided_slice %150 {offsets = [0, 0], sizes = [1, 64], strides = [1, 1]} : vector<1x192xf32> to vector<1x64xf32>
    %154 = vector.extract_strided_slice %150 {offsets = [0, 64], sizes = [1, 64], strides = [1, 1]} : vector<1x192xf32> to vector<1x64xf32>
    %155 = vector.extract_strided_slice %150 {offsets = [0, 128], sizes = [1, 64], strides = [1, 1]} : vector<1x192xf32> to vector<1x64xf32>
    %156 = arith.mulf %154, %139 : vector<1x64xf32>
    %157 = arith.mulf %153, %152 : vector<1x64xf32>
    %158 = arith.addf %156, %157 : vector<1x64xf32>
    %159 = math.tanh %158 : vector<1x64xf32>
    %160 = arith.mulf %155, %159 : vector<1x64xf32>
    %c0_25 = arith.constant 0 : index
    %c0_26 = arith.constant 0 : index
    %161 = vector.load %arg4[%c0_25, %c0_26] : memref<64x8xf32, #tpu.memory_space<vmem>>, vector<64x8xf32>
    %cst_27 = arith.constant dense<0.000000e+00> : vector<1x8xf32>
    %162 = tpu.matmul %160, %161, %cst_27 {dimension_numbers = #tpu.dot_dimension_numbers<[1], [0], [0], [1], [0, 0, 1, 1], [], []>} : vector<1x64xf32>, vector<64x8xf32>, vector<1x8xf32> -> vector<1x8xf32>
    %c0_28 = arith.constant 0 : index
    %c0_29 = arith.constant 0 : index
    %163 = vector.load %arg5[%c0_28, %c0_29] : memref<1x8xf32, #tpu.memory_space<vmem>>, vector<1x8xf32>
    %164 = arith.addf %162, %163 : vector<1x8xf32>
    %165 = arith.negf %164 : vector<1x8xf32>
    %166 = math.exp %165 : vector<1x8xf32>
    %cst_30 = arith.constant 1.000000e+00 : f32
    %167 = vector.broadcast %cst_30 : f32 to vector<1x8xf32>
    %168 = arith.addf %167, %166 : vector<1x8xf32>
    %169 = arith.divf %167, %168 : vector<1x8xf32>
    %c0_31 = arith.constant 0 : index
    %c0_32 = arith.constant 0 : index
    %170 = vector.load %arg6[%c0_31, %c0_32] : memref<1x8xf32, #tpu.memory_space<vmem>>, vector<1x8xf32>
    tpu.vector_store %arg6[%c0_31, %c0_32], %169 {strides = array<i32>} : memref<1x8xf32, #tpu.memory_space<vmem>>, vector<1x8xf32>,
    return
  }
}

</mosaic_0001>

<llo_original>
// kernel: tpu_custom_call.1
$region0: #{tpu_custom_call.1}
  #allocation0 [shape = 'u32[]', space=smem, size = 0x4, offset = 0x4, fixed_abs, tag = 'smem constant byte address 0x4 - core index']
  #allocation1 [shape = 'u32[144,128]{1,0:T(1,128)}', space=vmem, size = 0x12000, scoped, tag = 'internal scratch']
  %s0 = inlined_call_operand.vmem [shape: f32[8,64], index: 0, kind: input, shape index: {}]
  %s1 = inlined_call_operand.hbm [shape: f32[64,256], index: 1, kind: input, shape index: {}]
  %s2 = inlined_call_operand.hbm [shape: f32[64,256], index: 2, kind: input, shape index: {}]
  %s3 = inlined_call_operand.vmem [shape: f32[1,256], index: 3, kind: input, shape index: {}]
  %s4 = inlined_call_operand.vmem [shape: f32[64,8], index: 4, kind: input, shape index: {}]
  %s5 = inlined_call_operand.vmem [shape: f32[1,8], index: 5, kind: input, shape index: {}]
  %s6 = inlined_call_operand.hbm [shape: f32[1,8], index: 6, kind: output, shape index: {}]
  %s7 = sld [smem:[#allocation0]]
  $region42: #{tpu_custom_call.1} parent=0
    _
  %s9 = ssub.s32 1, %s7
  %s10 = scalar_select 0, %s9, %s7
  $region1: #{tpu_custom_call.1} parent=0
    #allocation2 [shape = 'u8[65536]{0}', space=vmem, size = 0x10000, scoped, tag = 'input window, operand 1, single buffered']
    #allocation3 [shape = 's32[1]{0}', space=sflag, size = 0x4, scoped, tag = 'scoped memory for tpu_custom_call.1']
    #allocation4 [shape = 's32[1]{0}', space=sflag, size = 0x4, scoped, tag = 'scoped memory for tpu_custom_call.1']
    #allocation5 [shape = 'u8[65536]{0}', space=vmem, size = 0x10000, scoped, tag = 'input window, operand 2, single buffered']
    #allocation6 [shape = 's32[1]{0}', space=sflag, size = 0x4, scoped, tag = 'scoped memory for tpu_custom_call.1']
    #allocation7 [shape = 'u8[512]{0}', space=vmem, size = 0x400, scoped, tag = 'output window, operand 0, single buffered']
    %11 = vsyncpa [#allocation3], 0
    %12 = vsyncpa [#allocation6], 0
    %13 = vsyncpa [#allocation4], 0
    // Predicated region
    $region2: #{tpu_custom_call.1} parent=1 // pred_check
      _
    $region3: #{tpu_custom_call.1} parent=1 // pred_check_branch
      %15 = sbr.rel (0) target = $region5
    $region4: #{tpu_custom_call.1} parent=1 // pred_region
      _
    $region5: #{tpu_custom_call.1} parent=1 // pred_fallthru
      _
    // Predicated region
    $region6: #{tpu_custom_call.1} parent=1 // pred_check
      _
    $region7: #{tpu_custom_call.1} parent=1 // pred_check_branch
      %17 = sbr.rel (0) target = $region9
    $region8: #{tpu_custom_call.1} parent=1 // pred_region
      %s19 = ssub.s32 2048, 2048
      %20 = vsyncadd [#allocation3], %s19
      %s21 = sshll.u32 [#allocation2], 4
      %s22 = int_to_ptr.vmem [resolvable:$true] %s21
      %27 = dma.hbm_to_vmem [thread:$0]  %s1, 2048, %s22, [#allocation3], 256, 256, 16
    $region9: #{tpu_custom_call.1} parent=1 // pred_fallthru
      _
    // Predicated region
    $region10: #{tpu_custom_call.1} parent=1 // pred_check
      _
    $region11: #{tpu_custom_call.1} parent=1 // pred_check_branch
      %29 = sbr.rel (0) target = $region13
    $region12: #{tpu_custom_call.1} parent=1 // pred_region
      %s31 = ssub.s32 2048, 2048
      %32 = vsyncadd [#allocation6], %s31
      %s33 = sshll.u32 [#allocation5], 4
      %s34 = int_to_ptr.vmem [resolvable:$true] %s33
      %39 = dma.hbm_to_vmem [thread:$0]  %s2, 2048, %s34, [#allocation6], 256, 256, 16
    $region13: #{tpu_custom_call.1} parent=1 // pred_fallthru
      _
    // Predicated region
    $region14: #{tpu_custom_call.1} parent=1 // pred_check
      _
    $region15: #{tpu_custom_call.1} parent=1 // pred_check_branch
      %41 = sbr.rel (0) target = $region17
    $region16: #{tpu_custom_call.1} parent=1 // pred_region
      _
    $region17: #{tpu_custom_call.1} parent=1 // pred_fallthru
      _
    // Predicated region
    $region18: #{tpu_custom_call.1} parent=1 // pred_check
      _
    $region19: #{tpu_custom_call.1} parent=1 // pred_check_branch
      %43 = sbr.rel (0) target = $region21
    $region20: #{tpu_custom_call.1} parent=1 // pred_region
      _
    $region21: #{tpu_custom_call.1} parent=1 // pred_fallthru
      _
    // Predicated region
    $region22: #{tpu_custom_call.1} parent=1 // pred_check
      _
    $region23: #{tpu_custom_call.1} parent=1 // pred_check_branch
      %45 = sbr.rel (0) target = $region25
    $region24: #{tpu_custom_call.1} parent=1 // pred_region
      _
    $region25: #{tpu_custom_call.1} parent=1 // pred_fallthru
      _
    // Predicated region
    $region26: #{tpu_custom_call.1} parent=1 // pred_check
      _
    $region27: #{tpu_custom_call.1} parent=1 // pred_check_branch
      %47 = sbr.rel (0) target = $region29
    $region28: #{tpu_custom_call.1} parent=1 // pred_region
      %48 = dma.done [#allocation3], 2048
    $region29: #{tpu_custom_call.1} parent=1 // pred_fallthru
      _
    // Predicated region
    $region30: #{tpu_custom_call.1} parent=1 // pred_check
      _
    $region31: #{tpu_custom_call.1} parent=1 // pred_check_branch
      %50 = sbr.rel (0) target = $region33
    $region32: #{tpu_custom_call.1} parent=1 // pred_region
      %51 = dma.done [#allocation6], 2048
    $region33: #{tpu_custom_call.1} parent=1 // pred_fallthru
      _
    %v52 = vld [vmem:[#allocation5] sm:$0xff]
    %v53 = vld [vmem:[#allocation5 + $0x8] sm:$0xff]
    %v54 = vld [vmem:[#allocation5 + $0x10] sm:$0xff]
    %v55 = vld [vmem:[#allocation5 + $0x18] sm:$0xff]
    %v56 = vld [vmem:[#allocation5 + $0x20] sm:$0xff]
    %v57 = vld [vmem:[#allocation5 + $0x28] sm:$0xff]
    %v58 = vld [vmem:[#allocation5 + $0x30] sm:$0xff]
    %v59 = vld [vmem:[#allocation5 + $0x38] sm:$0xff]
    %v60 = vld [vmem:[#allocation5 + $0x40] sm:$0xff]
    %v61 = vld [vmem:[#allocation5 + $0x48] sm:$0xff]
    %v62 = vld [vmem:[#allocation5 + $0x50] sm:$0xff]
    %v63 = vld [vmem:[#allocation5 + $0x58] sm:$0xff]
    %v64 = vld [vmem:[#allocation5 + $0x60] sm:$0xff]
    %v65 = vld [vmem:[#allocation5 + $0x68] sm:$0xff]
    %v66 = vld [vmem:[#allocation5 + $0x70] sm:$0xff]
    %v67 = vld [vmem:[#allocation5 + $0x78] sm:$0xff]
    %v68 = vld [vmem:[%s0] sm:$0xff]
    %v69 = vld [vmem:[#allocation2] sm:$0xff]
    %v70 = vld [vmem:[#allocation2 + $0x8] sm:$0xff]
    %v71 = vld [vmem:[#allocation2 + $0x10] sm:$0xff]
    %v72 = vld [vmem:[#allocation2 + $0x18] sm:$0xff]
    %v73 = vld [vmem:[#allocation2 + $0x20] sm:$0xff]
    %v74 = vld [vmem:[#allocation2 + $0x28] sm:$0xff]
    %v75 = vld [vmem:[#allocation2 + $0x30] sm:$0xff]
    %v76 = vld [vmem:[#allocation2 + $0x38] sm:$0xff]
    %v77 = vld [vmem:[#allocation2 + $0x40] sm:$0xff]
    %v78 = vld [vmem:[#allocation2 + $0x48] sm:$0xff]
    %v79 = vld [vmem:[#allocation2 + $0x50] sm:$0xff]
    %v80 = vld [vmem:[#allocation2 + $0x58] sm:$0xff]
    %v81 = vld [vmem:[#allocation2 + $0x60] sm:$0xff]
    %v82 = vld [vmem:[#allocation2 + $0x68] sm:$0xff]
    %v83 = vld [vmem:[#allocation2 + $0x70] sm:$0xff]
    %v84 = vld [vmem:[#allocation2 + $0x78] sm:$0xff]
    %v85 = vld [vmem:[%s3] sm:$0x3]
    %v87 = vlaneseq
    %v88 = vshrl.u32 %v87, 7
    %v89 = vsub.s32 0, %v88
    %v90 = vrot.slane %v85, %v89
    %v91 = vlaneseq
    %v92 = vshrl.u32 %v91, 7
    %v93 = vsub.s32 1, %v92
    %v94 = vrot.slane %v85, %v93
    %vm97 = vcmask 523264
    %v99 = vsel %vm97, %v68, 0
    %101 = vmatprep.subr.mxu0 %v70
    %102 = vmatpush1.msra.mxu0 %v69
    %103 = vmatprep.subr.mxu0 %v72
    %104 = vmatpush1.msra.mxu0 %v71
    %105 = vmatprep.subr.mxu0 %v74
    %106 = vmatpush1.msra.mxu0 %v73
    %107 = vmatprep.subr.mxu0 %v76
    %108 = vmatpush1.msra.mxu0 %v75
    %109 = vmatprep.subr.mxu0 %v78
    %110 = vmatpush1.msra.mxu0 %v77
    %111 = vmatprep.subr.mxu0 %v80
    %112 = vmatpush1.msra.mxu0 %v79
    %113 = vmatprep.subr.mxu0 %v82
    %114 = vmatpush1.msra.mxu0 %v81
    %115 = vmatprep.subr.mxu0 %v84
    %116 = vmatpush1.msra.mxu0 %v83
    %117 = vmatprep.subr.mxu0 0.0
    %118 = vmatpush1.msra.mxu0 0.0
    %119 = vmatprep.subr.mxu0 0.0
    %120 = vmatpush1.msra.mxu0 0.0
    %121 = vmatprep.subr.mxu0 0.0
    %122 = vmatpush1.msra.mxu0 0.0
    %123 = vmatprep.subr.mxu0 0.0
    %124 = vmatpush1.msra.mxu0 0.0
    %125 = vmatprep.subr.mxu0 0.0
    %126 = vmatpush1.msra.mxu0 0.0
    %127 = vmatprep.subr.mxu0 0.0
    %128 = vmatpush1.msra.mxu0 0.0
    %129 = vmatprep.subr.mxu0 0.0
    %130 = vmatpush1.msra.mxu0 0.0
    %131 = vmatprep.subr.mxu0 0.0
    %132 = vmatpush1.msra.mxu0 0.0
    %133 = vmatprep.subr.mxu0 0.0
    %134 = vmatpush1.msra.mxu0 0.0
    %135 = vmatprep.subr.mxu0 0.0
    %136 = vmatpush1.msra.mxu0 0.0
    %137 = vmatprep.subr.mxu0 0.0
    %138 = vmatpush1.msra.mxu0 0.0
    %139 = vmatprep.subr.mxu0 0.0
    %140 = vmatpush1.msra.mxu0 0.0
    %141 = vmatprep.subr.mxu0 0.0
    %142 = vmatpush1.msra.mxu0 0.0
    %143 = vmatprep.subr.mxu0 0.0
    %144 = vmatpush1.msra.mxu0 0.0
    %145 = vmatprep.subr.mxu0 0.0
    %146 = vmatpush1.msra.mxu0 0.0
    %147 = vmatprep.subr.mxu0 0.0
    %148 = vmatpush1.msra.mxu0 0.0
    %149 = vmatprep.subr.mxu0 0.0
    %150 = vmatpush1.msra.mxu0 0.0
    %151 = vmatprep.subr.mxu0 0.0
    %152 = vmatpush1.msra.mxu0 0.0
    %153 = vmatprep.subr.mxu0 0.0
    %154 = vmatpush1.msra.mxu0 0.0
    %155 = vmatprep.subr.mxu0 0.0
    %156 = vmatpush1.msra.mxu0 0.0
    %157 = vmatprep.subr.mxu0 0.0
    %158 = vmatpush1.msra.mxu0 0.0
    %159 = vmatprep.subr.mxu0 0.0
    %160 = vmatpush1.msra.mxu0 0.0
    %161 = vmatprep.subr.mxu0 0.0
    %162 = vmatpush1.msra.mxu0 0.0
    %163 = vmatprep.subr.mxu0 0.0
    %164 = vmatpush1.msra.mxu0 0.0
    %165 = vmatprep.mubr.f32.mxu0 0.0
    %166 = vmatmul.mubr.f32.gmra.mrb[0].mxu0 %v99
    %v167 = vpop.f32.mrb[0].mxu0
    %v168 = vadd.f32 %v90, %v167
    %v169 = vpop.f32.mrb[0].mxu0
    %v170 = vadd.f32 %v94, %v169
    %171 = vdwg.mxu0
    %v173 = vsel %vm97, 0.0, 0
    %175 = vmatprep.subr.mxu0 %v53
    %176 = vmatpush1.msra.mxu0 %v52
    %177 = vmatprep.subr.mxu0 %v55
    %178 = vmatpush1.msra.mxu0 %v54
    %179 = vmatprep.subr.mxu0 %v57
    %180 = vmatpush1.msra.mxu0 %v56
    %181 = vmatprep.subr.mxu0 %v59
    %182 = vmatpush1.msra.mxu0 %v58
    %183 = vmatprep.subr.mxu0 %v61
    %184 = vmatpush1.msra.mxu0 %v60
    %185 = vmatprep.subr.mxu0 %v63
    %186 = vmatpush1.msra.mxu0 %v62
    %187 = vmatprep.subr.mxu0 %v65
    %188 = vmatpush1.msra.mxu0 %v64
    %189 = vmatprep.subr.mxu0 %v67
    %190 = vmatpush1.msra.mxu0 %v66
    %191 = vmatprep.subr.mxu0 0.0
    %192 = vmatpush1.msra.mxu0 0.0
    %193 = vmatprep.subr.mxu0 0.0
    %194 = vmatpush1.msra.mxu0 0.0
    %195 = vmatprep.subr.mxu0 0.0
    %196 = vmatpush1.msra.mxu0 0.0
    %197 = vmatprep.subr.mxu0 0.0
    %198 = vmatpush1.msra.mxu0 0.0
    %199 = vmatprep.subr.mxu0 0.0
    %200 = vmatpush1.msra.mxu0 0.0
    %201 = vmatprep.subr.mxu0 0.0
    %202 = vmatpush1.msra.mxu0 0.0
    %203 = vmatprep.subr.mxu0 0.0
    %204 = vmatpush1.msra.mxu0 0.0
    %205 = vmatprep.subr.mxu0 0.0
    %206 = vmatpush1.msra.mxu0 0.0
    %207 = vmatprep.subr.mxu0 0.0
    %208 = vmatpush1.msra.mxu0 0.0
    %209 = vmatprep.subr.mxu0 0.0
    %210 = vmatpush1.msra.mxu0 0.0
    %211 = vmatprep.subr.mxu0 0.0
    %212 = vmatpush1.msra.mxu0 0.0
    %213 = vmatprep.subr.mxu0 0.0
    %214 = vmatpush1.msra.mxu0 0.0
    %215 = vmatprep.subr.mxu0 0.0
    %216 = vmatpush1.msra.mxu0 0.0
    %217 = vmatprep.subr.mxu0 0.0
    %218 = vmatpush1.msra.mxu0 0.0
    %219 = vmatprep.subr.mxu0 0.0
    %220 = vmatpush1.msra.mxu0 0.0
    %221 = vmatprep.subr.mxu0 0.0
    %222 = vmatpush1.msra.mxu0 0.0
    %223 = vmatprep.subr.mxu0 0.0
    %224 = vmatpush1.msra.mxu0 0.0
    %225 = vmatprep.subr.mxu0 0.0
    %226 = vmatpush1.msra.mxu0 0.0
    %227 = vmatprep.subr.mxu0 0.0
    %228 = vmatpush1.msra.mxu0 0.0
    %229 = vmatprep.subr.mxu0 0.0
    %230 = vmatpush1.msra.mxu0 0.0
    %231 = vmatprep.subr.mxu0 0.0
    %232 = vmatpush1.msra.mxu0 0.0
    %233 = vmatprep.subr.mxu0 0.0
    %234 = vmatpush1.msra.mxu0 0.0
    %235 = vmatprep.subr.mxu0 0.0
    %236 = vmatpush1.msra.mxu0 0.0
    %237 = vmatprep.subr.mxu0 0.0
    %238 = vmatpush1.msra.mxu0 0.0
    %239 = vmatprep.mubr.f32.mxu0 0.0
    %240 = vmatmul.mubr.f32.gmra.mrb[0].mxu0 %v173
    %v241 = vpop.f32.mrb[0].mxu0
    %v242 = vadd.f32 0.0, %v241
    %v243 = vpop.f32.mrb[0].mxu0
    %v244 = vadd.f32 0.0, %v243
    %245 = vdwg.mxu0
    %v246 = vadd.f32 %v168, %v242
    %v247 = vadd.f32 %v170, %v244
    %v248 = vxor.u32 %v246, 2147483648
    %v249 = vxor.u32 %v247, 2147483648
    %v250 = vmul.f32 %v248, 1.442695
    %v251 = vpow.pop %v250
    %v252 = vmul.f32 %v249, 1.442695
    %v253 = vpow.pop %v252
    %v254 = vadd.f32 %v251, 1.0
    %v255 = vadd.f32 %v253, 1.0
    %v256 = vrcp.pop %v254
    %v257 = vmul.f32 1.0, %v256
    %v258 = vrcp.pop %v255
    %v259 = vmul.f32 1.0, %v258
    %v260 = vtanh.pop %v247
    %v261 = vmul.f32 %v257, 0.0
    %263 = vrot.lane.b32.xlu0 %v260, 64
    %v264 = vpop.permute.xlu0 %263
    %v266 = vmul.f32 %v257, %v264
    %268 = vrot.lane.b32.xlu0 %v266, 64
    %v269 = vpop.permute.xlu0 %268
    %v271 = vadd.f32 %v261, %v269
    %v272 = vtanh.pop %v271
    %274 = vrot.lane.b32.xlu0 %v272, 64
    %v275 = vpop.permute.xlu0 %274
    %v277 = vmul.f32 %v259, %v275
    %v279 = vsel %vm97, %v277, 0
    %281 = vmatprep.subr.mxu0 %v53
    %282 = vmatpush1.msra.mxu0 %v52
    %283 = vmatprep.subr.mxu0 %v55
    %284 = vmatpush1.msra.mxu0 %v54
    %285 = vmatprep.subr.mxu0 %v57
    %286 = vmatpush1.msra.mxu0 %v56
    %287 = vmatprep.subr.mxu0 %v59
    %288 = vmatpush1.msra.mxu0 %v58
    %289 = vmatprep.subr.mxu0 %v61
    %290 = vmatpush1.msra.mxu0 %v60
    %291 = vmatprep.subr.mxu0 %v63
    %292 = vmatpush1.msra.mxu0 %v62
    %293 = vmatprep.subr.mxu0 %v65
    %294 = vmatpush1.msra.mxu0 %v64
    %295 = vmatprep.subr.mxu0 %v67
    %296 = vmatpush1.msra.mxu0 %v66
    %297 = vmatprep.subr.mxu0 0.0
    %298 = vmatpush1.msra.mxu0 0.0
    %299 = vmatprep.subr.mxu0 0.0
    %300 = vmatpush1.msra.mxu0 0.0
    %301 = vmatprep.subr.mxu0 0.0
    %302 = vmatpush1.msra.mxu0 0.0
    %303 = vmatprep.subr.mxu0 0.0
    %304 = vmatpush1.msra.mxu0 0.0
    %305 = vmatprep.subr.mxu0 0.0
    %306 = vmatpush1.msra.mxu0 0.0
    %307 = vmatprep.subr.mxu0 0.0
    %308 = vmatpush1.msra.mxu0 0.0
    %309 = vmatprep.subr.mxu0 0.0
    %310 = vmatpush1.msra.mxu0 0.0
    %311 = vmatprep.subr.mxu0 0.0
    %312 = vmatpush1.msra.mxu0 0.0
    %313 = vmatprep.subr.mxu0 0.0
    %314 = vmatpush1.msra.mxu0 0.0
    %315 = vmatprep.subr.mxu0 0.0
    %316 = vmatpush1.msra.mxu0 0.0
    %317 = vmatprep.subr.mxu0 0.0
    %318 = vmatpush1.msra.mxu0 0.0
    %319 = vmatprep.subr.mxu0 0.0
    %320 = vmatpush1.msra.mxu0 0.0
    %321 = vmatprep.subr.mxu0 0.0
    %322 = vmatpush1.msra.mxu0 0.0
    %323 = vmatprep.subr.mxu0 0.0
    %324 = vmatpush1.msra.mxu0 0.0
    %325 = vmatprep.subr.mxu0 0.0
    %326 = vmatpush1.msra.mxu0 0.0
    %327 = vmatprep.subr.mxu0 0.0
    %328 = vmatpush1.msra.mxu0 0.0
    %329 = vmatprep.subr.mxu0 0.0
    %330 = vmatpush1.msra.mxu0 0.0
    %331 = vmatprep.subr.mxu0 0.0
    %332 = vmatpush1.msra.mxu0 0.0
    %333 = vmatprep.subr.mxu0 0.0
    %334 = vmatpush1.msra.mxu0 0.0
    %335 = vmatprep.subr.mxu0 0.0
    %336 = vmatpush1.msra.mxu0 0.0
    %337 = vmatprep.subr.mxu0 0.0
    %338 = vmatpush1.msra.mxu0 0.0
    %339 = vmatprep.subr.mxu0 0.0
    %340 = vmatpush1.msra.mxu0 0.0
    %341 = vmatprep.subr.mxu0 0.0
    %342 = vmatpush1.msra.mxu0 0.0
    %343 = vmatprep.subr.mxu0 0.0
    %344 = vmatpush1.msra.mxu0 0.0
    %345 = vmatprep.mubr.f32.mxu0 0.0
    %346 = vmatmul.mubr.f32.gmra.mrb[0].mxu0 %v279
    %v347 = vpop.f32.mrb[0].mxu0
    %v348 = vadd.f32 0.0, %v347
    %v349 = vpop.f32.mrb[0].mxu0
    %v350 = vadd.f32 0.0, %v349
    %351 = vdwg.mxu0
    %v354 = vrot.slane %v348, 7
    %v355 = vrot.slane %v350, 7
    %v358 = vadd.f32 %v168, %v354
    %v359 = vadd.f32 %v170, %v355
    %v360 = vxor.u32 %v358, 2147483648
    %v361 = vxor.u32 %v359, 2147483648
    %v362 = vmul.f32 %v360, 1.442695
    %v363 = vpow.pop %v362
    %v364 = vmul.f32 %v361, 1.442695
    %v365 = vpow.pop %v364
    %v366 = vadd.f32 %v363, 1.0
    %v367 = vadd.f32 %v365, 1.0
    %v368 = vrcp.pop %v366
    %v369 = vmul.f32 1.0, %v368
    %v370 = vrcp.pop %v367
    %v371 = vmul.f32 1.0, %v370
    %v372 = vtanh.pop %v359
    %v374 = vrot.slane %v271, 7
    %v376 = vmul.f32 %v369, %v374
    %378 = vrot.lane.b32.xlu0 %v372, 64
    %v379 = vpop.permute.xlu0 %378
    %v381 = vmul.f32 %v369, %v379
    %383 = vrot.lane.b32.xlu0 %v381, 64
    %v384 = vpop.permute.xlu0 %383
    %v386 = vadd.f32 %v376, %v384
    %v387 = vtanh.pop %v386
    %389 = vrot.lane.b32.xlu0 %v387, 64
    %v390 = vpop.permute.xlu0 %389
    %v392 = vmul.f32 %v371, %v390
    %v394 = vrot.slane %v392, 1
    %v395 = vsel %vm97, %v394, 0
    %397 = vmatprep.subr.mxu0 %v53
    %398 = vmatpush1.msra.mxu0 %v52
    %399 = vmatprep.subr.mxu0 %v55
    %400 = vmatpush1.msra.mxu0 %v54
    %401 = vmatprep.subr.mxu0 %v57
    %402 = vmatpush1.msra.mxu0 %v56
    %403 = vmatprep.subr.mxu0 %v59
    %404 = vmatpush1.msra.mxu0 %v58
    %405 = vmatprep.subr.mxu0 %v61
    %406 = vmatpush1.msra.mxu0 %v60
    %407 = vmatprep.subr.mxu0 %v63
    %408 = vmatpush1.msra.mxu0 %v62
    %409 = vmatprep.subr.mxu0 %v65
    %410 = vmatpush1.msra.mxu0 %v64
    %411 = vmatprep.subr.mxu0 %v67
    %412 = vmatpush1.msra.mxu0 %v66
    %413 = vmatprep.subr.mxu0 0.0
    %414 = vmatpush1.msra.mxu0 0.0
    %415 = vmatprep.subr.mxu0 0.0
    %416 = vmatpush1.msra.mxu0 0.0
    %417 = vmatprep.subr.mxu0 0.0
    %418 = vmatpush1.msra.mxu0 0.0
    %419 = vmatprep.subr.mxu0 0.0
    %420 = vmatpush1.msra.mxu0 0.0
    %421 = vmatprep.subr.mxu0 0.0
    %422 = vmatpush1.msra.mxu0 0.0
    %423 = vmatprep.subr.mxu0 0.0
    %424 = vmatpush1.msra.mxu0 0.0
    %425 = vmatprep.subr.mxu0 0.0
    %426 = vmatpush1.msra.mxu0 0.0
    %427 = vmatprep.subr.mxu0 0.0
    %428 = vmatpush1.msra.mxu0 0.0
    %429 = vmatprep.subr.mxu0 0.0
    %430 = vmatpush1.msra.mxu0 0.0
    %431 = vmatprep.subr.mxu0 0.0
    %432 = vmatpush1.msra.mxu0 0.0
    %433 = vmatprep.subr.mxu0 0.0
    %434 = vmatpush1.msra.mxu0 0.0
    %435 = vmatprep.subr.mxu0 0.0
    %436 = vmatpush1.msra.mxu0 0.0
    %437 = vmatprep.subr.mxu0 0.0
    %438 = vmatpush1.msra.mxu0 0.0
    %439 = vmatprep.subr.mxu0 0.0
    %440 = vmatpush1.msra.mxu0 0.0
    %441 = vmatprep.subr.mxu0 0.0
    %442 = vmatpush1.msra.mxu0 0.0
    %443 = vmatprep.subr.mxu0 0.0
    %444 = vmatpush1.msra.mxu0 0.0
    %445 = vmatprep.subr.mxu0 0.0
    %446 = vmatpush1.msra.mxu0 0.0
    %447 = vmatprep.subr.mxu0 0.0
    %448 = vmatpush1.msra.mxu0 0.0
    %449 = vmatprep.subr.mxu0 0.0
    %450 = vmatpush1.msra.mxu0 0.0
    %451 = vmatprep.subr.mxu0 0.0
    %452 = vmatpush1.msra.mxu0 0.0
    %453 = vmatprep.subr.mxu0 0.0
    %454 = vmatpush1.msra.mxu0 0.0
    %455 = vmatprep.subr.mxu0 0.0
    %456 = vmatpush1.msra.mxu0 0.0
    %457 = vmatprep.subr.mxu0 0.0
    %458 = vmatpush1.msra.mxu0 0.0
    %459 = vmatprep.subr.mxu0 0.0
    %460 = vmatpush1.msra.mxu0 0.0
    %461 = vmatprep.mubr.f32.mxu0 0.0
    %462 = vmatmul.mubr.f32.gmra.mrb[0].mxu0 %v395
    %v463 = vpop.f32.mrb[0].mxu0
    %v464 = vadd.f32 0.0, %v463
    %v465 = vpop.f32.mrb[0].mxu0
    %v466 = vadd.f32 0.0, %v465
    %467 = vdwg.mxu0
    %v470 = vrot.slane %v464, 6
    %v471 = vrot.slane %v466, 6
    %v474 = vadd.f32 %v168, %v470
    %v475 = vadd.f32 %v170, %v471
    %v476 = vxor.u32 %v474, 2147483648
    %v477 = vxor.u32 %v475, 2147483648
    %v478 = vmul.f32 %v476, 1.442695
    %v479 = vpow.pop %v478
    %v480 = vmul.f32 %v477, 1.442695
    %v481 = vpow.pop %v480
    %v482 = vadd.f32 %v479, 1.0
    %v483 = vadd.f32 %v481, 1.0
    %v484 = vrcp.pop %v482
    %v485 = vmul.f32 1.0, %v484
    %v486 = vrcp.pop %v483
    %v487 = vmul.f32 1.0, %v486
    %v488 = vtanh.pop %v475
    %v490 = vrot.slane %v386, 7
    %v492 = vmul.f32 %v485, %v490
    %494 = vrot.lane.b32.xlu0 %v488, 64
    %v495 = vpop.permute.xlu0 %494
    %v497 = vmul.f32 %v485, %v495
    %499 = vrot.lane.b32.xlu0 %v497, 64
    %v500 = vpop.permute.xlu0 %499
    %v502 = vadd.f32 %v492, %v500
    %v503 = vtanh.pop %v502
    %505 = vrot.lane.b32.xlu0 %v503, 64
    %v506 = vpop.permute.xlu0 %505
    %v508 = vmul.f32 %v487, %v506
    %v510 = vrot.slane %v508, 2
    %v511 = vsel %vm97, %v510, 0
    %513 = vmatprep.subr.mxu0 %v53
    %514 = vmatpush1.msra.mxu0 %v52
    %515 = vmatprep.subr.mxu0 %v55
    %516 = vmatpush1.msra.mxu0 %v54
    %517 = vmatprep.subr.mxu0 %v57
    %518 = vmatpush1.msra.mxu0 %v56
    %519 = vmatprep.subr.mxu0 %v59
    %520 = vmatpush1.msra.mxu0 %v58
    %521 = vmatprep.subr.mxu0 %v61
    %522 = vmatpush1.msra.mxu0 %v60
    %523 = vmatprep.subr.mxu0 %v63
    %524 = vmatpush1.msra.mxu0 %v62
    %525 = vmatprep.subr.mxu0 %v65
    %526 = vmatpush1.msra.mxu0 %v64
    %527 = vmatprep.subr.mxu0 %v67
    %528 = vmatpush1.msra.mxu0 %v66
    %529 = vmatprep.subr.mxu0 0.0
    %530 = vmatpush1.msra.mxu0 0.0
    %531 = vmatprep.subr.mxu0 0.0
    %532 = vmatpush1.msra.mxu0 0.0
    %533 = vmatprep.subr.mxu0 0.0
    %534 = vmatpush1.msra.mxu0 0.0
    %535 = vmatprep.subr.mxu0 0.0
    %536 = vmatpush1.msra.mxu0 0.0
    %537 = vmatprep.subr.mxu0 0.0
    %538 = vmatpush1.msra.mxu0 0.0
    %539 = vmatprep.subr.mxu0 0.0
    %540 = vmatpush1.msra.mxu0 0.0
    %541 = vmatprep.subr.mxu0 0.0
    %542 = vmatpush1.msra.mxu0 0.0
    %543 = vmatprep.subr.mxu0 0.0
    %544 = vmatpush1.msra.mxu0 0.0
    %545 = vmatprep.subr.mxu0 0.0
    %546 = vmatpush1.msra.mxu0 0.0
    %547 = vmatprep.subr.mxu0 0.0
    %548 = vmatpush1.msra.mxu0 0.0
    %549 = vmatprep.subr.mxu0 0.0
    %550 = vmatpush1.msra.mxu0 0.0
    %551 = vmatprep.subr.mxu0 0.0
    %552 = vmatpush1.msra.mxu0 0.0
    %553 = vmatprep.subr.mxu0 0.0
    %554 = vmatpush1.msra.mxu0 0.0
    %555 = vmatprep.subr.mxu0 0.0
    %556 = vmatpush1.msra.mxu0 0.0
    %557 = vmatprep.subr.mxu0 0.0
    %558 = vmatpush1.msra.mxu0 0.0
    %559 = vmatprep.subr.mxu0 0.0
    %560 = vmatpush1.msra.mxu0 0.0
    %561 = vmatprep.subr.mxu0 0.0
    %562 = vmatpush1.msra.mxu0 0.0
    %563 = vmatprep.subr.mxu0 0.0
    %564 = vmatpush1.msra.mxu0 0.0
    %565 = vmatprep.subr.mxu0 0.0
    %566 = vmatpush1.msra.mxu0 0.0
    %567 = vmatprep.subr.mxu0 0.0
    %568 = vmatpush1.msra.mxu0 0.0
    %569 = vmatprep.subr.mxu0 0.0
    %570 = vmatpush1.msra.mxu0 0.0
    %571 = vmatprep.subr.mxu0 0.0
    %572 = vmatpush1.msra.mxu0 0.0
    %573 = vmatprep.subr.mxu0 0.0
    %574 = vmatpush1.msra.mxu0 0.0
    %575 = vmatprep.subr.mxu0 0.0
    %576 = vmatpush1.msra.mxu0 0.0
    %577 = vmatprep.mubr.f32.mxu0 0.0
    %578 = vmatmul.mubr.f32.gmra.mrb[0].mxu0 %v511
    %v579 = vpop.f32.mrb[0].mxu0
    %v580 = vadd.f32 0.0, %v579
    %v581 = vpop.f32.mrb[0].mxu0
    %v582 = vadd.f32 0.0, %v581
    %583 = vdwg.mxu0
    %v586 = vrot.slane %v580, 5
    %v587 = vrot.slane %v582, 5
    %v590 = vadd.f32 %v168, %v586
    %v591 = vadd.f32 %v170, %v587
    %v592 = vxor.u32 %v590, 2147483648
    %v593 = vxor.u32 %v591, 2147483648
    %v594 = vmul.f32 %v592, 1.442695
    %v595 = vpow.pop %v594
    %v596 = vmul.f32 %v593, 1.442695
    %v597 = vpow.pop %v596
    %v598 = vadd.f32 %v595, 1.0
    %v599 = vadd.f32 %v597, 1.0
    %v600 = vrcp.pop %v598
    %v601 = vmul.f32 1.0, %v600
    %v602 = vrcp.pop %v599
    %v603 = vmul.f32 1.0, %v602
    %v604 = vtanh.pop %v591
    %v606 = vrot.slane %v502, 7
    %v608 = vmul.f32 %v601, %v606
    %610 = vrot.lane.b32.xlu0 %v604, 64
    %v611 = vpop.permute.xlu0 %610
    %v613 = vmul.f32 %v601, %v611
    %615 = vrot.lane.b32.xlu0 %v613, 64
    %v616 = vpop.permute.xlu0 %615
    %v618 = vadd.f32 %v608, %v616
    %v619 = vtanh.pop %v618
    %621 = vrot.lane.b32.xlu0 %v619, 64
    %v622 = vpop.permute.xlu0 %621
    %v624 = vmul.f32 %v603, %v622
    %v626 = vrot.slane %v624, 3
    %v627 = vsel %vm97, %v626, 0
    %629 = vmatprep.subr.mxu0 %v53
    %630 = vmatpush1.msra.mxu0 %v52
    %631 = vmatprep.subr.mxu0 %v55
    %632 = vmatpush1.msra.mxu0 %v54
    %633 = vmatprep.subr.mxu0 %v57
    %634 = vmatpush1.msra.mxu0 %v56
    %635 = vmatprep.subr.mxu0 %v59
    %636 = vmatpush1.msra.mxu0 %v58
    %637 = vmatprep.subr.mxu0 %v61
    %638 = vmatpush1.msra.mxu0 %v60
    %639 = vmatprep.subr.mxu0 %v63
    %640 = vmatpush1.msra.mxu0 %v62
    %641 = vmatprep.subr.mxu0 %v65
    %642 = vmatpush1.msra.mxu0 %v64
    %643 = vmatprep.subr.mxu0 %v67
    %644 = vmatpush1.msra.mxu0 %v66
    %645 = vmatprep.subr.mxu0 0.0
    %646 = vmatpush1.msra.mxu0 0.0
    %647 = vmatprep.subr.mxu0 0.0
    %648 = vmatpush1.msra.mxu0 0.0
    %649 = vmatprep.subr.mxu0 0.0
    %650 = vmatpush1.msra.mxu0 0.0
    %651 = vmatprep.subr.mxu0 0.0
    %652 = vmatpush1.msra.mxu0 0.0
    %653 = vmatprep.subr.mxu0 0.0
    %654 = vmatpush1.msra.mxu0 0.0
    %655 = vmatprep.subr.mxu0 0.0
    %656 = vmatpush1.msra.mxu0 0.0
    %657 = vmatprep.subr.mxu0 0.0
    %658 = vmatpush1.msra.mxu0 0.0
    %659 = vmatprep.subr.mxu0 0.0
    %660 = vmatpush1.msra.mxu0 0.0
    %661 = vmatprep.subr.mxu0 0.0
    %662 = vmatpush1.msra.mxu0 0.0
    %663 = vmatprep.subr.mxu0 0.0
    %664 = vmatpush1.msra.mxu0 0.0
    %665 = vmatprep.subr.mxu0 0.0
    %666 = vmatpush1.msra.mxu0 0.0
    %667 = vmatprep.subr.mxu0 0.0
    %668 = vmatpush1.msra.mxu0 0.0
    %669 = vmatprep.subr.mxu0 0.0
    %670 = vmatpush1.msra.mxu0 0.0
    %671 = vmatprep.subr.mxu0 0.0
    %672 = vmatpush1.msra.mxu0 0.0
    %673 = vmatprep.subr.mxu0 0.0
    %674 = vmatpush1.msra.mxu0 0.0
    %675 = vmatprep.subr.mxu0 0.0
    %676 = vmatpush1.msra.mxu0 0.0
    %677 = vmatprep.subr.mxu0 0.0
    %678 = vmatpush1.msra.mxu0 0.0
    %679 = vmatprep.subr.mxu0 0.0
    %680 = vmatpush1.msra.mxu0 0.0
    %681 = vmatprep.subr.mxu0 0.0
    %682 = vmatpush1.msra.mxu0 0.0
    %683 = vmatprep.subr.mxu0 0.0
    %684 = vmatpush1.msra.mxu0 0.0
    %685 = vmatprep.subr.mxu0 0.0
    %686 = vmatpush1.msra.mxu0 0.0
    %687 = vmatprep.subr.mxu0 0.0
    %688 = vmatpush1.msra.mxu0 0.0
    %689 = vmatprep.subr.mxu0 0.0
    %690 = vmatpush1.msra.mxu0 0.0
    %691 = vmatprep.subr.mxu0 0.0
    %692 = vmatpush1.msra.mxu0 0.0
    %693 = vmatprep.mubr.f32.mxu0 0.0
    %694 = vmatmul.mubr.f32.gmra.mrb[0].mxu0 %v627
    %v695 = vpop.f32.mrb[0].mxu0
    %v696 = vadd.f32 0.0, %v695
    %v697 = vpop.f32.mrb[0].mxu0
    %v698 = vadd.f32 0.0, %v697
    %699 = vdwg.mxu0
    %v702 = vrot.slane %v696, 4
    %v703 = vrot.slane %v698, 4
    %v706 = vadd.f32 %v168, %v702
    %v707 = vadd.f32 %v170, %v703
    %v708 = vxor.u32 %v706, 2147483648
    %v709 = vxor.u32 %v707, 2147483648
    %v710 = vmul.f32 %v708, 1.442695
    %v711 = vpow.pop %v710
    %v712 = vmul.f32 %v709, 1.442695
    %v713 = vpow.pop %v712
    %v714 = vadd.f32 %v711, 1.0
    %v715 = vadd.f32 %v713, 1.0
    %v716 = vrcp.pop %v714
    %v717 = vmul.f32 1.0, %v716
    %v718 = vrcp.pop %v715
    %v719 = vmul.f32 1.0, %v718
    %v720 = vtanh.pop %v707
    %v722 = vrot.slane %v618, 7
    %v724 = vmul.f32 %v717, %v722
    %726 = vrot.lane.b32.xlu0 %v720, 64
    %v727 = vpop.permute.xlu0 %726
    %v729 = vmul.f32 %v717, %v727
    %731 = vrot.lane.b32.xlu0 %v729, 64
    %v732 = vpop.permute.xlu0 %731
    %v734 = vadd.f32 %v724, %v732
    %v735 = vtanh.pop %v734
    %737 = vrot.lane.b32.xlu0 %v735, 64
    %v738 = vpop.permute.xlu0 %737
    %v740 = vmul.f32 %v719, %v738
    %v742 = vrot.slane %v740, 4
    %v743 = vsel %vm97, %v742, 0
    %745 = vmatprep.subr.mxu0 %v53
    %746 = vmatpush1.msra.mxu0 %v52
    %747 = vmatprep.subr.mxu0 %v55
    %748 = vmatpush1.msra.mxu0 %v54
    %749 = vmatprep.subr.mxu0 %v57
    %750 = vmatpush1.msra.mxu0 %v56
    %751 = vmatprep.subr.mxu0 %v59
    %752 = vmatpush1.msra.mxu0 %v58
    %753 = vmatprep.subr.mxu0 %v61
    %754 = vmatpush1.msra.mxu0 %v60
    %755 = vmatprep.subr.mxu0 %v63
    %756 = vmatpush1.msra.mxu0 %v62
    %757 = vmatprep.subr.mxu0 %v65
    %758 = vmatpush1.msra.mxu0 %v64
    %759 = vmatprep.subr.mxu0 %v67
    %760 = vmatpush1.msra.mxu0 %v66
    %761 = vmatprep.subr.mxu0 0.0
    %762 = vmatpush1.msra.mxu0 0.0
    %763 = vmatprep.subr.mxu0 0.0
    %764 = vmatpush1.msra.mxu0 0.0
    %765 = vmatprep.subr.mxu0 0.0
    %766 = vmatpush1.msra.mxu0 0.0
    %767 = vmatprep.subr.mxu0 0.0
    %768 = vmatpush1.msra.mxu0 0.0
    %769 = vmatprep.subr.mxu0 0.0
    %770 = vmatpush1.msra.mxu0 0.0
    %771 = vmatprep.subr.mxu0 0.0
    %772 = vmatpush1.msra.mxu0 0.0
    %773 = vmatprep.subr.mxu0 0.0
    %774 = vmatpush1.msra.mxu0 0.0
    %775 = vmatprep.subr.mxu0 0.0
    %776 = vmatpush1.msra.mxu0 0.0
    %777 = vmatprep.subr.mxu0 0.0
    %778 = vmatpush1.msra.mxu0 0.0
    %779 = vmatprep.subr.mxu0 0.0
    %780 = vmatpush1.msra.mxu0 0.0
    %781 = vmatprep.subr.mxu0 0.0
    %782 = vmatpush1.msra.mxu0 0.0
    %783 = vmatprep.subr.mxu0 0.0
    %784 = vmatpush1.msra.mxu0 0.0
    %785 = vmatprep.subr.mxu0 0.0
    %786 = vmatpush1.msra.mxu0 0.0
    %787 = vmatprep.subr.mxu0 0.0
    %788 = vmatpush1.msra.mxu0 0.0
    %789 = vmatprep.subr.mxu0 0.0
    %790 = vmatpush1.msra.mxu0 0.0
    %791 = vmatprep.subr.mxu0 0.0
    %792 = vmatpush1.msra.mxu0 0.0
    %793 = vmatprep.subr.mxu0 0.0
    %794 = vmatpush1.msra.mxu0 0.0
    %795 = vmatprep.subr.mxu0 0.0
    %796 = vmatpush1.msra.mxu0 0.0
    %797 = vmatprep.subr.mxu0 0.0
    %798 = vmatpush1.msra.mxu0 0.0
    %799 = vmatprep.subr.mxu0 0.0
    %800 = vmatpush1.msra.mxu0 0.0
    %801 = vmatprep.subr.mxu0 0.0
    %802 = vmatpush1.msra.mxu0 0.0
    %803 = vmatprep.subr.mxu0 0.0
    %804 = vmatpush1.msra.mxu0 0.0
    %805 = vmatprep.subr.mxu0 0.0
    %806 = vmatpush1.msra.mxu0 0.0
    %807 = vmatprep.subr.mxu0 0.0
    %808 = vmatpush1.msra.mxu0 0.0
    %809 = vmatprep.mubr.f32.mxu0 0.0
    %810 = vmatmul.mubr.f32.gmra.mrb[0].mxu0 %v743
    %v811 = vpop.f32.mrb[0].mxu0
    %v812 = vadd.f32 0.0, %v811
    %v813 = vpop.f32.mrb[0].mxu0
    %v814 = vadd.f32 0.0, %v813
    %815 = vdwg.mxu0
    %v818 = vrot.slane %v812, 3
    %v819 = vrot.slane %v814, 3
    %v822 = vadd.f32 %v168, %v818
    %v823 = vadd.f32 %v170, %v819
    %v824 = vxor.u32 %v822, 2147483648
    %v825 = vxor.u32 %v823, 2147483648
    %v826 = vmul.f32 %v824, 1.442695
    %v827 = vpow.pop %v826
    %v828 = vmul.f32 %v825, 1.442695
    %v829 = vpow.pop %v828
    %v830 = vadd.f32 %v827, 1.0
    %v831 = vadd.f32 %v829, 1.0
    %v832 = vrcp.pop %v830
    %v833 = vmul.f32 1.0, %v832
    %v834 = vrcp.pop %v831
    %v835 = vmul.f32 1.0, %v834
    %v836 = vtanh.pop %v823
    %v838 = vrot.slane %v734, 7
    %v840 = vmul.f32 %v833, %v838
    %842 = vrot.lane.b32.xlu0 %v836, 64
    %v843 = vpop.permute.xlu0 %842
    %v845 = vmul.f32 %v833, %v843
    %847 = vrot.lane.b32.xlu0 %v845, 64
    %v848 = vpop.permute.xlu0 %847
    %v850 = vadd.f32 %v840, %v848
    %v851 = vtanh.pop %v850
    %853 = vrot.lane.b32.xlu0 %v851, 64
    %v854 = vpop.permute.xlu0 %853
    %v856 = vmul.f32 %v835, %v854
    %v858 = vrot.slane %v856, 5
    %v859 = vsel %vm97, %v858, 0
    %861 = vmatprep.subr.mxu0 %v53
    %862 = vmatpush1.msra.mxu0 %v52
    %863 = vmatprep.subr.mxu0 %v55
    %864 = vmatpush1.msra.mxu0 %v54
    %865 = vmatprep.subr.mxu0 %v57
    %866 = vmatpush1.msra.mxu0 %v56
    %867 = vmatprep.subr.mxu0 %v59
    %868 = vmatpush1.msra.mxu0 %v58
    %869 = vmatprep.subr.mxu0 %v61
    %870 = vmatpush1.msra.mxu0 %v60
    %871 = vmatprep.subr.mxu0 %v63
    %872 = vmatpush1.msra.mxu0 %v62
    %873 = vmatprep.subr.mxu0 %v65
    %874 = vmatpush1.msra.mxu0 %v64
    %875 = vmatprep.subr.mxu0 %v67
    %876 = vmatpush1.msra.mxu0 %v66
    %877 = vmatprep.subr.mxu0 0.0
    %878 = vmatpush1.msra.mxu0 0.0
    %879 = vmatprep.subr.mxu0 0.0
    %880 = vmatpush1.msra.mxu0 0.0
    %881 = vmatprep.subr.mxu0 0.0
    %882 = vmatpush1.msra.mxu0 0.0
    %883 = vmatprep.subr.mxu0 0.0
    %884 = vmatpush1.msra.mxu0 0.0
    %885 = vmatprep.subr.mxu0 0.0
    %886 = vmatpush1.msra.mxu0 0.0
    %887 = vmatprep.subr.mxu0 0.0
    %888 = vmatpush1.msra.mxu0 0.0
    %889 = vmatprep.subr.mxu0 0.0
    %890 = vmatpush1.msra.mxu0 0.0
    %891 = vmatprep.subr.mxu0 0.0
    %892 = vmatpush1.msra.mxu0 0.0
    %893 = vmatprep.subr.mxu0 0.0
    %894 = vmatpush1.msra.mxu0 0.0
    %895 = vmatprep.subr.mxu0 0.0
    %896 = vmatpush1.msra.mxu0 0.0
    %897 = vmatprep.subr.mxu0 0.0
    %898 = vmatpush1.msra.mxu0 0.0
    %899 = vmatprep.subr.mxu0 0.0
    %900 = vmatpush1.msra.mxu0 0.0
    %901 = vmatprep.subr.mxu0 0.0
    %902 = vmatpush1.msra.mxu0 0.0
    %903 = vmatprep.subr.mxu0 0.0
    %904 = vmatpush1.msra.mxu0 0.0
    %905 = vmatprep.subr.mxu0 0.0
    %906 = vmatpush1.msra.mxu0 0.0
    %907 = vmatprep.subr.mxu0 0.0
    %908 = vmatpush1.msra.mxu0 0.0
    %909 = vmatprep.subr.mxu0 0.0
    %910 = vmatpush1.msra.mxu0 0.0
    %911 = vmatprep.subr.mxu0 0.0
    %912 = vmatpush1.msra.mxu0 0.0
    %913 = vmatprep.subr.mxu0 0.0
    %914 = vmatpush1.msra.mxu0 0.0
    %915 = vmatprep.subr.mxu0 0.0
    %916 = vmatpush1.msra.mxu0 0.0
    %917 = vmatprep.subr.mxu0 0.0
    %918 = vmatpush1.msra.mxu0 0.0
    %919 = vmatprep.subr.mxu0 0.0
    %920 = vmatpush1.msra.mxu0 0.0
    %921 = vmatprep.subr.mxu0 0.0
    %922 = vmatpush1.msra.mxu0 0.0
    %923 = vmatprep.subr.mxu0 0.0
    %924 = vmatpush1.msra.mxu0 0.0
    %925 = vmatprep.mubr.f32.mxu0 0.0
    %926 = vmatmul.mubr.f32.gmra.mrb[0].mxu0 %v859
    %v927 = vpop.f32.mrb[0].mxu0
    %v928 = vadd.f32 0.0, %v927
    %v929 = vpop.f32.mrb[0].mxu0
    %v930 = vadd.f32 0.0, %v929
    %931 = vdwg.mxu0
    %v934 = vrot.slane %v928, 2
    %v935 = vrot.slane %v930, 2
    %v938 = vadd.f32 %v168, %v934
    %v939 = vadd.f32 %v170, %v935
    %v940 = vxor.u32 %v938, 2147483648
    %v941 = vxor.u32 %v939, 2147483648
    %v942 = vmul.f32 %v940, 1.442695
    %v943 = vpow.pop %v942
    %v944 = vmul.f32 %v941, 1.442695
    %v945 = vpow.pop %v944
    %v946 = vadd.f32 %v943, 1.0
    %v947 = vadd.f32 %v945, 1.0
    %v948 = vrcp.pop %v946
    %v949 = vmul.f32 1.0, %v948
    %v950 = vrcp.pop %v947
    %v951 = vmul.f32 1.0, %v950
    %v952 = vtanh.pop %v939
    %v954 = vrot.slane %v850, 7
    %v956 = vmul.f32 %v949, %v954
    %958 = vrot.lane.b32.xlu0 %v952, 64
    %v959 = vpop.permute.xlu0 %958
    %v961 = vmul.f32 %v949, %v959
    %963 = vrot.lane.b32.xlu0 %v961, 64
    %v964 = vpop.permute.xlu0 %963
    %v966 = vadd.f32 %v956, %v964
    %v967 = vtanh.pop %v966
    %969 = vrot.lane.b32.xlu0 %v967, 64
    %v970 = vpop.permute.xlu0 %969
    %v972 = vmul.f32 %v951, %v970
    %v974 = vrot.slane %v972, 6
    %v975 = vsel %vm97, %v974, 0
    %977 = vmatprep.subr.mxu0 %v53
    %978 = vmatpush1.msra.mxu0 %v52
    %979 = vmatprep.subr.mxu0 %v55
    %980 = vmatpush1.msra.mxu0 %v54
    %981 = vmatprep.subr.mxu0 %v57
    %982 = vmatpush1.msra.mxu0 %v56
    %983 = vmatprep.subr.mxu0 %v59
    %984 = vmatpush1.msra.mxu0 %v58
    %985 = vmatprep.subr.mxu0 %v61
    %986 = vmatpush1.msra.mxu0 %v60
    %987 = vmatprep.subr.mxu0 %v63
    %988 = vmatpush1.msra.mxu0 %v62
    %989 = vmatprep.subr.mxu0 %v65
    %990 = vmatpush1.msra.mxu0 %v64
    %991 = vmatprep.subr.mxu0 %v67
    %992 = vmatpush1.msra.mxu0 %v66
    %993 = vmatprep.subr.mxu0 0.0
    %994 = vmatpush1.msra.mxu0 0.0
    %995 = vmatprep.subr.mxu0 0.0
    %996 = vmatpush1.msra.mxu0 0.0
    %997 = vmatprep.subr.mxu0 0.0
    %998 = vmatpush1.msra.mxu0 0.0
    %999 = vmatprep.subr.mxu0 0.0
    %1000 = vmatpush1.msra.mxu0 0.0
    %1001 = vmatprep.subr.mxu0 0.0
    %1002 = vmatpush1.msra.mxu0 0.0
    %1003 = vmatprep.subr.mxu0 0.0
    %1004 = vmatpush1.msra.mxu0 0.0
    %1005 = vmatprep.subr.mxu0 0.0
    %1006 = vmatpush1.msra.mxu0 0.0
    %1007 = vmatprep.subr.mxu0 0.0
    %1008 = vmatpush1.msra.mxu0 0.0
    %1009 = vmatprep.subr.mxu0 0.0
    %1010 = vmatpush1.msra.mxu0 0.0
    %1011 = vmatprep.subr.mxu0 0.0
    %1012 = vmatpush1.msra.mxu0 0.0
    %1013 = vmatprep.subr.mxu0 0.0
    %1014 = vmatpush1.msra.mxu0 0.0
    %1015 = vmatprep.subr.mxu0 0.0
    %1016 = vmatpush1.msra.mxu0 0.0
    %1017 = vmatprep.subr.mxu0 0.0
    %1018 = vmatpush1.msra.mxu0 0.0
    %1019 = vmatprep.subr.mxu0 0.0
    %1020 = vmatpush1.msra.mxu0 0.0
    %1021 = vmatprep.subr.mxu0 0.0
    %1022 = vmatpush1.msra.mxu0 0.0
    %1023 = vmatprep.subr.mxu0 0.0
    %1024 = vmatpush1.msra.mxu0 0.0
    %1025 = vmatprep.subr.mxu0 0.0
    %1026 = vmatpush1.msra.mxu0 0.0
    %1027 = vmatprep.subr.mxu0 0.0
    %1028 = vmatpush1.msra.mxu0 0.0
    %1029 = vmatprep.subr.mxu0 0.0
    %1030 = vmatpush1.msra.mxu0 0.0
    %1031 = vmatprep.subr.mxu0 0.0
    %1032 = vmatpush1.msra.mxu0 0.0
    %1033 = vmatprep.subr.mxu0 0.0
    %1034 = vmatpush1.msra.mxu0 0.0
    %1035 = vmatprep.subr.mxu0 0.0
    %1036 = vmatpush1.msra.mxu0 0.0
    %1037 = vmatprep.subr.mxu0 0.0
    %1038 = vmatpush1.msra.mxu0 0.0
    %1039 = vmatprep.subr.mxu0 0.0
    %1040 = vmatpush1.msra.mxu0 0.0
    %1041 = vmatprep.mubr.f32.mxu0 0.0
    %1042 = vmatmul.mubr.f32.gmra.mrb[0].mxu0 %v975
    %v1043 = vpop.f32.mrb[0].mxu0
    %v1044 = vadd.f32 0.0, %v1043
    %v1045 = vpop.f32.mrb[0].mxu0
    %v1046 = vadd.f32 0.0, %v1045
    %1047 = vdwg.mxu0
    %v1050 = vrot.slane %v1044, 1
    %v1051 = vrot.slane %v1046, 1
    %v1054 = vadd.f32 %v168, %v1050
    %v1055 = vadd.f32 %v170, %v1051
    %v1056 = vxor.u32 %v1054, 2147483648
    %v1057 = vxor.u32 %v1055, 2147483648
    %v1058 = vmul.f32 %v1056, 1.442695
    %v1059 = vpow.pop %v1058
    %v1060 = vmul.f32 %v1057, 1.442695
    %v1061 = vpow.pop %v1060
    %v1062 = vadd.f32 %v1059, 1.0
    %v1063 = vadd.f32 %v1061, 1.0
    %v1064 = vrcp.pop %v1062
    %v1065 = vmul.f32 1.0, %v1064
    %v1066 = vrcp.pop %v1063
    %v1067 = vmul.f32 1.0, %v1066
    %v1068 = vtanh.pop %v1055
    %v1070 = vrot.slane %v966, 7
    %v1072 = vmul.f32 %v1065, %v1070
    %1074 = vrot.lane.b32.xlu0 %v1068, 64
    %v1075 = vpop.permute.xlu0 %1074
    %v1077 = vmul.f32 %v1065, %v1075
    %1079 = vrot.lane.b32.xlu0 %v1077, 64
    %v1080 = vpop.permute.xlu0 %1079
    %v1082 = vadd.f32 %v1072, %v1080
    %v1083 = vtanh.pop %v1082
    %1085 = vrot.lane.b32.xlu0 %v1083, 64
    %v1086 = vpop.permute.xlu0 %1085
    %v1088 = vmul.f32 %v1067, %v1086
    %v1089 = vld [vmem:[%s4] sm:$0xff]
    %v1090 = vld [vmem:[%s4 + $0x8] sm:$0xff]
    %v1091 = vld [vmem:[%s4 + $0x10] sm:$0xff]
    %v1092 = vld [vmem:[%s4 + $0x18] sm:$0xff]
    %v1093 = vld [vmem:[%s4 + $0x20] sm:$0xff]
    %v1094 = vld [vmem:[%s4 + $0x28] sm:$0xff]
    %v1095 = vld [vmem:[%s4 + $0x30] sm:$0xff]
    %v1096 = vld [vmem:[%s4 + $0x38] sm:$0xff]
    %v1097 = vld [vmem:[%s5] sm:$0x1]
    %v1099 = vrot.slane %v1088, 7
    %v1100 = vsel %vm97, %v1099, 0
    %1102 = vmatprep.subr.mxu0 0.0
    %1103 = vmatpush1.msra.mxu0 %v1089
    %1104 = vmatprep.subr.mxu0 0.0
    %1105 = vmatpush1.msra.mxu0 %v1090
    %1106 = vmatprep.subr.mxu0 0.0
    %1107 = vmatpush1.msra.mxu0 %v1091
    %1108 = vmatprep.subr.mxu0 0.0
    %1109 = vmatpush1.msra.mxu0 %v1092
    %1110 = vmatprep.subr.mxu0 0.0
    %1111 = vmatpush1.msra.mxu0 %v1093
    %1112 = vmatprep.subr.mxu0 0.0
    %1113 = vmatpush1.msra.mxu0 %v1094
    %1114 = vmatprep.subr.mxu0 0.0
    %1115 = vmatpush1.msra.mxu0 %v1095
    %1116 = vmatprep.subr.mxu0 0.0
    %1117 = vmatpush1.msra.mxu0 %v1096
    %1118 = vmatprep.subr.mxu0 0.0
    %1119 = vmatpush1.msra.mxu0 0.0
    %1120 = vmatprep.subr.mxu0 0.0
    %1121 = vmatpush1.msra.mxu0 0.0
    %1122 = vmatprep.subr.mxu0 0.0
    %1123 = vmatpush1.msra.mxu0 0.0
    %1124 = vmatprep.subr.mxu0 0.0
    %1125 = vmatpush1.msra.mxu0 0.0
    %1126 = vmatprep.subr.mxu0 0.0
    %1127 = vmatpush1.msra.mxu0 0.0
    %1128 = vmatprep.subr.mxu0 0.0
    %1129 = vmatpush1.msra.mxu0 0.0
    %1130 = vmatprep.subr.mxu0 0.0
    %1131 = vmatpush1.msra.mxu0 0.0
    %1132 = vmatprep.subr.mxu0 0.0
    %1133 = vmatpush1.msra.mxu0 0.0
    %1134 = vmatprep.subr.mxu0 0.0
    %1135 = vmatpush1.msra.mxu0 0.0
    %1136 = vmatprep.subr.mxu0 0.0
    %1137 = vmatpush1.msra.mxu0 0.0
    %1138 = vmatprep.subr.mxu0 0.0
    %1139 = vmatpush1.msra.mxu0 0.0
    %1140 = vmatprep.subr.mxu0 0.0
    %1141 = vmatpush1.msra.mxu0 0.0
    %1142 = vmatprep.subr.mxu0 0.0
    %1143 = vmatpush1.msra.mxu0 0.0
    %1144 = vmatprep.subr.mxu0 0.0
    %1145 = vmatpush1.msra.mxu0 0.0
    %1146 = vmatprep.subr.mxu0 0.0
    %1147 = vmatpush1.msra.mxu0 0.0
    %1148 = vmatprep.subr.mxu0 0.0
    %1149 = vmatpush1.msra.mxu0 0.0
    %1150 = vmatprep.subr.mxu0 0.0
    %1151 = vmatpush1.msra.mxu0 0.0
    %1152 = vmatprep.subr.mxu0 0.0
    %1153 = vmatpush1.msra.mxu0 0.0
    %1154 = vmatprep.subr.mxu0 0.0
    %1155 = vmatpush1.msra.mxu0 0.0
    %1156 = vmatprep.subr.mxu0 0.0
    %1157 = vmatpush1.msra.mxu0 0.0
    %1158 = vmatprep.subr.mxu0 0.0
    %1159 = vmatpush1.msra.mxu0 0.0
    %1160 = vmatprep.subr.mxu0 0.0
    %1161 = vmatpush1.msra.mxu0 0.0
    %1162 = vmatprep.subr.mxu0 0.0
    %1163 = vmatpush1.msra.mxu0 0.0
    %1164 = vmatprep.subr.mxu0 0.0
    %1165 = vmatpush1.msra.mxu0 0.0
    %1166 = vmatprep.mubr.f32.mxu0 0.0
    %1167 = vmatmul.mubr.f32.gmra.mrb[0].mxu0 %v1100
    %v1168 = vpop.f32.mrb[0].mxu0
    %v1169 = vadd.f32 %v1097, %v1168
    %v1170 = vpop.f32.mrb[0].mxu0
    %1171 = vdwg.mxu0
    %v1172 = vxor.u32 %v1169, 2147483648
    %v1173 = vmul.f32 %v1172, 1.442695
    %v1174 = vpow.pop %v1173
    %v1175 = vadd.f32 %v1174, 1.0
    %v1176 = vrcp.pop %v1175
    %v1177 = vmul.f32 1.0, %v1176
    %vm1178 = vcmask 57344
    %1179 = vst.msk [vmem:[#allocation7] sm:$0x1] %vm1178, %v1177
    // Predicated region
    $region34: #{tpu_custom_call.1} parent=1 // pred_check
      _
    $region35: #{tpu_custom_call.1} parent=1 // pred_check_branch
      %1181 = sbr.rel (0) target = $region37
    $region36: #{tpu_custom_call.1} parent=1 // pred_region
      %s1183 = ssub.s32 16, 16
      %1184 = vsyncadd [#allocation4], %s1183
      %s1186 = sshll.u32 [#allocation7], 4
      %s1187 = int_to_ptr.vmem [resolvable:$true] %s1186
      %1189 = dma.vmem_to_hbm [thread:$0]  %s1187, 16, %s6, [#allocation4]
    $region37: #{tpu_custom_call.1} parent=1 // pred_fallthru
      _
    // Predicated region
    $region38: #{tpu_custom_call.1} parent=1 // pred_check
      _
    $region39: #{tpu_custom_call.1} parent=1 // pred_check_branch
      %1191 = sbr.rel (0) target = $region41
    $region40: #{tpu_custom_call.1} parent=1 // pred_region
      %1192 = dma.done [#allocation4], 16
    $region41: #{tpu_custom_call.1} parent=1 // pred_fallthru
      _
    %1193 = vsyncpa [#allocation3], 1
    %1194 = vsyncpa [#allocation6], 1
    %1195 = vsyncpa [#allocation4], 1

</llo_original>
